<compile_context>
chip_gen: v6e
topology: v6e:2x2x1
jax: 0.10.0
libtpu: 0.0.40
codegen_flags: <defaults>
</compile_context>

<pallas_src>
import numpy as np
import jax
import jax.numpy as jnp
from jax.experimental import pallas as pl
from jax.experimental.pallas import tpu as pltpu


_CC_CAP = 32  # max channels handled by the in-kernel static unroll per block


def _round_up(n, m):
    return ((n + m - 1) // m) * m


def _largest_proper_divisor(n):
    for d in range(2, n + 1):
        if n % d == 0:
            return n // d
    return 1


def _vmem_capacity_bytes():
    """Physical VMEM of the local chip; conservative (v7x) fallback."""
    try:
        info = pltpu.get_tpu_info()
        cap = getattr(info, "vmem_capacity_bytes", None)
        if cap:
            return int(cap)
    except Exception:
        pass
    return 64 * 1024 * 1024  # v7x has the smallest per-core VMEM


def _make_ppt_kernel(CC, EP, compute_dtype):
    def kernel(idx_ref, x_ref, o_ref):
        # idx_ref: (CC, EP) int32 — absolute flattened source position per channel
        # x_ref / o_ref: (BB, CC, EP) input/output block, EP is the lane axis.
        # Hoisted once per grid step (invariant across channels).
        iota_q = jax.lax.broadcasted_iota(jnp.int32, (EP, EP), 0)

        # Static unroll over the channels of this block (CC is capped by the
        # tiler).  Static slices keep lowering simple and each one-hot's live
        # range ends at its matmul.
        for c in range(CC):
            row = idx_ref[pl.ds(c, 1), :]                 # (1, EP) int32
            # One-hot gather matrix on the VPU: g[q, l] = (q == idx_ep[c, l]).
            g = (iota_q == row).astype(compute_dtype)     # (EP, EP)
            xc = x_ref[:, c, :]                           # (BB, EP)
            # Exact gather expressed as one lane-dense MXU matmul.
            y = jnp.dot(xc, g, preferred_element_type=jnp.float32)
            o_ref[:, c, :] = y.astype(o_ref.dtype)

    return kernel


def ppt_shuffle_pallas(x, shuffled_idx):
    """x: (B, C, E, P) float, shuffled_idx: (C, P) int.

    Returns out with out[b, c, e, p] = x[b, c, e, shuffled_idx[c, p]].
    """
    B, C, E, P = x.shape
    assert shuffled_idx.shape == (C, P)
    assert jnp.issubdtype(x.dtype, jnp.floating), (
        "one-hot-matmul gather is exact only for floating inputs")

    EP = E * P
    itemsize = x.dtype.itemsize

    # Absolute flattened source index: idx_ep[c, e*P + p] = e*P + idx[c, p].
    idx = shuffled_idx.astype(jnp.int32)
    idx_ep = (jnp.arange(E, dtype=jnp.int32)[None, :, None] * P
              + idx[:, None, :]).reshape(C, EP)

    # Free contiguous view: minor dim becomes lane-dense (128 for E=8, P=16).
    x2 = x.reshape(B, C, EP)

    # ---- VMEM budget with PADDED tile bytes -------------------------------
    sublane = {4: 8, 2: 16, 1: 32}.get(itemsize, 8)
    ep_pad = _round_up(EP, 128)

    def blk_bytes(bb, cc):
        return bb * _round_up(cc, sublane) * ep_pad * itemsize

    vmem_cap = _vmem_capacity_bytes()
    vmem_limit = min((vmem_cap * 3) // 4, 96 * 1024 * 1024)   # ~48 MiB v7x, 96 MiB v5e/v6e
    block_budget = max((vmem_limit - 4 * 1024 * 1024) // 5, 1 << 16)

    # ---- channels per block: prefer full C (long contiguous HBM runs) -----
    CC = C
    if C > _CC_CAP or blk_bytes(1, C) > block_budget:
        cands = [d for d in range(sublane, min(C, _CC_CAP) + 1)
                 if C % d == 0 and d % sublane == 0
                 and blk_bytes(1, d) <= block_budget]
        CC = max(cands) if cands else C   # full-C block is always a legal shape

    # ---- batch per block: largest divisor of B that fits the budget -------
    BB = 1
    for d in range(1, B + 1):
        if B % d == 0 and blk_bytes(d, CC) <= block_budget:
            BB = d

    # ---- keep v7x's two TensorCores busy: avoid a single huge grid step ----
    if (B // BB) * (C // CC) == 1 and B > 1 and blk_bytes(BB, CC) >= (4 << 20):
        BB = _largest_proper_divisor(B)

    # Limit must cover what we actually request (2 in + 2 out buffers + slack).
    vmem_limit = int(max(vmem_limit, 4 * blk_bytes(BB, CC) + (8 << 20)))

    grid = (B // BB, C // CC)
    kernel = _make_ppt_kernel(CC, EP, x.dtype)

    flops = 2 * B * C * EP * EP                    # MXU work of the one-hot gather
    bytes_accessed = 2 * B * C * EP * itemsize + C * EP * 4

    out2 = pl.pallas_call(
        kernel,
        out_shape=jax.ShapeDtypeStruct((B, C, EP), x.dtype),
        grid=grid,
        in_specs=[
            # Per-block slice of the (C, EP) absolute-index table (tiny).
            pl.BlockSpec((CC, EP), lambda b, g: (g, 0)),
            # Input block straight out of the (B, C, E*P) contiguous view.
            pl.BlockSpec((BB, CC, EP), lambda b, g: (b, g, 0)),
        ],
        out_specs=pl.BlockSpec((BB, CC, EP), lambda b, g: (b, g, 0)),
        compiler_params=pltpu.CompilerParams(
            dimension_semantics=("parallel", "parallel"),
            vmem_limit_bytes=vmem_limit,
        ),
        cost_estimate=pl.CostEstimate(
            flops=flops, transcendentals=0, bytes_accessed=bytes_accessed),
    )(idx_ep, x2)

    return out2.reshape(B, C, E, P)


def build_permutation_index_tensor(channel_num, patch_num, permute_freq,
                                   permute_tensor_size, seed=0):
    """Deterministic re-implementation of PPT._create_single_process_permutation
    with permute_strategy='random' (pairwise index swaps). Host-side setup."""
    rng = np.random.RandomState(seed)
    total = []
    for _ in range(permute_tensor_size):
        per_channel = []
        for _ in range(channel_num):
            idx = np.arange(patch_num)
            for _ in range(permute_freq):
                i1, i2 = rng.randint(0, patch_num, size=2)
                idx[i1], idx[i2] = idx[i2], idx[i1]
            per_channel.append(idx.copy())
        total.append(np.stack(per_channel, axis=0))
    return np.stack(total, axis=0).astype(np.int32)  # (T, C, P)


if __name__ == "__main__":
    # Small, module-consistent shapes: E*P = 8*16 = 128 (lane-dense minor dim).
    B, C, E = 2, 4, 8                 # batch, channels, embedding
    patch_len = 4
    patch_num = 16                    # P
    original_time_len = patch_len * patch_num
    permute_freq = 5
    permute_tensor_size = 32          # small synthetic table (module default 1000)

    # Precomputed permutation index table (host side, mirrors PPT._permute
    # with strategy='random').
    perm_table = jnp.asarray(
        build_permutation_index_tensor(C, patch_num, permute_freq,
                                       permute_tensor_size, seed=0))

    key = jax.random.PRNGKey(0)
    kx, kidx = jax.random.split(key)
    x = jax.random.normal(kx, (B, C, E, patch_num), dtype=jnp.float32)

    # forward(): torch.randint(0, T - 1) samples [0, T-2]; jax.random.randint's
    # maxval is also exclusive, so the range matches exactly.
    random_idx = jax.random.randint(kidx, (), 0, permute_tensor_size - 1)
    shuffled_idx = perm_table[random_idx]             # (C, P)

    out = jax.block_until_ready(ppt_shuffle_pallas(x, shuffled_idx))

    # Pure-JAX reference of the gather semantics.
    ref = jnp.take_along_axis(
        x,
        jnp.broadcast_to(shuffled_idx[None, :, None, :], (B, C, E, patch_num)),
        axis=3)
    np.testing.assert_allclose(np.asarray(out), np.asarray(ref), rtol=0, atol=0)

    print("KERNEL_OK")
</pallas_src>

<mosaic_0001>
module attributes {stable_mosaic.version = 11 : i64} {
  func.func @kernel(%arg0: i32, %arg1: i32, %arg2: memref<4x128xi32, #tpu.memory_space<vmem>>, %arg3: memref<2x4x128xf32, #tpu.memory_space<vmem>>, %arg4: memref<2x4x128xf32, #tpu.memory_space<vmem>>) attributes {dimension_semantics = [#tpu.dimension_semantics<parallel>, #tpu.dimension_semantics<parallel>], iteration_bounds = array<i64: 1, 1>, scalar_prefetch = 0 : i64, scratch_operands = 0 : i64, tpu.core_type = #tpu.core_type<tc>, window_params = [{transform_indices = @transform_0, window_bounds = array<i64: 4, 128>}, {transform_indices = @transform_1, window_bounds = array<i64: 2, 4, 128>}, {transform_indices = @transform_2, window_bounds = array<i64: 2, 4, 128>}]} {
    %0 = tpu.iota {dimensions = array<i32: 0>} : vector<128x128xi32>
    %c0 = arith.constant 0 : index
    %c0_0 = arith.constant 0 : index
    %1 = vector.load %arg2[%c0, %c0_0] : memref<4x128xi32, #tpu.memory_space<vmem>>, vector<1x128xi32>
    %2 = vector.broadcast %1 : vector<1x128xi32> to vector<128x128xi32>
    %3 = arith.cmpi eq, %0, %2 : vector<128x128xi32>
    %4 = arith.extui %3 : vector<128x128xi1> to vector<128x128xi32>
    %5 = arith.sitofp %4 : vector<128x128xi32> to vector<128x128xf32>
    %c0_1 = arith.constant 0 : index
    %c0_2 = arith.constant 0 : index
    %c0_3 = arith.constant 0 : index
    %6 = vector.load %arg3[%c0_1, %c0_2, %c0_3] : memref<2x4x128xf32, #tpu.memory_space<vmem>>, vector<2x1x128xf32>
    %7 = vector.shape_cast %6 : vector<2x1x128xf32> to vector<2x128xf32>
    %cst = arith.constant dense<0.000000e+00> : vector<2x128xf32>
    %8 = tpu.matmul %7, %5, %cst {dimension_numbers = #tpu.dot_dimension_numbers<[1], [0], [0], [1], [0, 0, 1, 1], [], []>} : vector<2x128xf32>, vector<128x128xf32>, vector<2x128xf32> -> vector<2x128xf32>
    %c0_4 = arith.constant 0 : index
    %c0_5 = arith.constant 0 : index
    %c0_6 = arith.constant 0 : index
    %9 = vector.load %arg4[%c0_4, %c0_5, %c0_6] : memref<2x4x128xf32, #tpu.memory_space<vmem>>, vector<2x1x128xf32>
    %10 = vector.shape_cast %9 : vector<2x1x128xf32> to vector<2x128xf32>
    %11 = vector.shape_cast %8 : vector<2x128xf32> to vector<2x1x128xf32>
    tpu.vector_store %arg4[%c0_4, %c0_5, %c0_6], %11 {strides = array<i32>} : memref<2x4x128xf32, #tpu.memory_space<vmem>>, vector<2x1x128xf32>,
    %c1 = arith.constant 1 : index
    %c0_7 = arith.constant 0 : index
    %12 = vector.load %arg2[%c1, %c0_7] : memref<4x128xi32, #tpu.memory_space<vmem>>, vector<1x128xi32>
    %13 = vector.broadcast %12 : vector<1x128xi32> to vector<128x128xi32>
    %14 = arith.cmpi eq, %0, %13 : vector<128x128xi32>
    %15 = arith.extui %14 : vector<128x128xi1> to vector<128x128xi32>
    %16 = arith.sitofp %15 : vector<128x128xi32> to vector<128x128xf32>
    %c0_8 = arith.constant 0 : index
    %c1_9 = arith.constant 1 : index
    %c0_10 = arith.constant 0 : index
    %17 = vector.load %arg3[%c0_8, %c1_9, %c0_10] : memref<2x4x128xf32, #tpu.memory_space<vmem>>, vector<2x1x128xf32>
    %18 = vector.shape_cast %17 : vector<2x1x128xf32> to vector<2x128xf32>
    %cst_11 = arith.constant dense<0.000000e+00> : vector<2x128xf32>
    %19 = tpu.matmul %18, %16, %cst_11 {dimension_numbers = #tpu.dot_dimension_numbers<[1], [0], [0], [1], [0, 0, 1, 1], [], []>} : vector<2x128xf32>, vector<128x128xf32>, vector<2x128xf32> -> vector<2x128xf32>
    %c0_12 = arith.constant 0 : index
    %c1_13 = arith.constant 1 : index
    %c0_14 = arith.constant 0 : index
    %20 = vector.load %arg4[%c0_12, %c1_13, %c0_14] : memref<2x4x128xf32, #tpu.memory_space<vmem>>, vector<2x1x128xf32>
    %21 = vector.shape_cast %20 : vector<2x1x128xf32> to vector<2x128xf32>
    %22 = vector.shape_cast %19 : vector<2x128xf32> to vector<2x1x128xf32>
    tpu.vector_store %arg4[%c0_12, %c1_13, %c0_14], %22 {strides = array<i32>} : memref<2x4x128xf32, #tpu.memory_space<vmem>>, vector<2x1x128xf32>,
    %c2 = arith.constant 2 : index
    %c0_15 = arith.constant 0 : index
    %23 = vector.load %arg2[%c2, %c0_15] : memref<4x128xi32, #tpu.memory_space<vmem>>, vector<1x128xi32>
    %24 = vector.broadcast %23 : vector<1x128xi32> to vector<128x128xi32>
    %25 = arith.cmpi eq, %0, %24 : vector<128x128xi32>
    %26 = arith.extui %25 : vector<128x128xi1> to vector<128x128xi32>
    %27 = arith.sitofp %26 : vector<128x128xi32> to vector<128x128xf32>
    %c0_16 = arith.constant 0 : index
    %c2_17 = arith.constant 2 : index
    %c0_18 = arith.constant 0 : index
    %28 = vector.load %arg3[%c0_16, %c2_17, %c0_18] : memref<2x4x128xf32, #tpu.memory_space<vmem>>, vector<2x1x128xf32>
    %29 = vector.shape_cast %28 : vector<2x1x128xf32> to vector<2x128xf32>
    %cst_19 = arith.constant dense<0.000000e+00> : vector<2x128xf32>
    %30 = tpu.matmul %29, %27, %cst_19 {dimension_numbers = #tpu.dot_dimension_numbers<[1], [0], [0], [1], [0, 0, 1, 1], [], []>} : vector<2x128xf32>, vector<128x128xf32>, vector<2x128xf32> -> vector<2x128xf32>
    %c0_20 = arith.constant 0 : index
    %c2_21 = arith.constant 2 : index
    %c0_22 = arith.constant 0 : index
    %31 = vector.load %arg4[%c0_20, %c2_21, %c0_22] : memref<2x4x128xf32, #tpu.memory_space<vmem>>, vector<2x1x128xf32>
    %32 = vector.shape_cast %31 : vector<2x1x128xf32> to vector<2x128xf32>
    %33 = vector.shape_cast %30 : vector<2x128xf32> to vector<2x1x128xf32>
    tpu.vector_store %arg4[%c0_20, %c2_21, %c0_22], %33 {strides = array<i32>} : memref<2x4x128xf32, #tpu.memory_space<vmem>>, vector<2x1x128xf32>,
    %c3 = arith.constant 3 : index
    %c0_23 = arith.constant 0 : index
    %34 = vector.load %arg2[%c3, %c0_23] : memref<4x128xi32, #tpu.memory_space<vmem>>, vector<1x128xi32>
    %35 = vector.broadcast %34 : vector<1x128xi32> to vector<128x128xi32>
    %36 = arith.cmpi eq, %0, %35 : vector<128x128xi32>
    %37 = arith.extui %36 : vector<128x128xi1> to vector<128x128xi32>
    %38 = arith.sitofp %37 : vector<128x128xi32> to vector<128x128xf32>
    %c0_24 = arith.constant 0 : index
    %c3_25 = arith.constant 3 : index
    %c0_26 = arith.constant 0 : index
    %39 = vector.load %arg3[%c0_24, %c3_25, %c0_26] : memref<2x4x128xf32, #tpu.memory_space<vmem>>, vector<2x1x128xf32>
    %40 = vector.shape_cast %39 : vector<2x1x128xf32> to vector<2x128xf32>
    %cst_27 = arith.constant dense<0.000000e+00> : vector<2x128xf32>
    %41 = tpu.matmul %40, %38, %cst_27 {dimension_numbers = #tpu.dot_dimension_numbers<[1], [0], [0], [1], [0, 0, 1, 1], [], []>} : vector<2x128xf32>, vector<128x128xf32>, vector<2x128xf32> -> vector<2x128xf32>
    %c0_28 = arith.constant 0 : index
    %c3_29 = arith.constant 3 : index
    %c0_30 = arith.constant 0 : index
    %42 = vector.load %arg4[%c0_28, %c3_29, %c0_30] : memref<2x4x128xf32, #tpu.memory_space<vmem>>, vector<2x1x128xf32>
    %43 = vector.shape_cast %42 : vector<2x1x128xf32> to vector<2x128xf32>
    %44 = vector.shape_cast %41 : vector<2x128xf32> to vector<2x1x128xf32>
    tpu.vector_store %arg4[%c0_28, %c3_29, %c0_30], %44 {strides = array<i32>} : memref<2x4x128xf32, #tpu.memory_space<vmem>>, vector<2x1x128xf32>,
    return
  }
  func.func @transform_0(%arg0: i32, %arg1: i32) -> (i32, i32) {
    %c0_i32 = arith.constant 0 : i32
    %c0_i32_0 = arith.constant 0 : i32
    return %arg1, %c0_i32 : i32, i32
  }
  func.func @transform_1(%arg0: i32, %arg1: i32) -> (i32, i32, i32) {
    %c0_i32 = arith.constant 0 : i32
    %c0_i32_0 = arith.constant 0 : i32
    return %arg0, %arg1, %c0_i32 : i32, i32, i32
  }
  func.func @transform_2(%arg0: i32, %arg1: i32) -> (i32, i32, i32) {
    %c0_i32 = arith.constant 0 : i32
    %c0_i32_0 = arith.constant 0 : i32
    return %arg0, %arg1, %c0_i32 : i32, i32, i32
  }
}

</mosaic_0001>

<llo_original>
// kernel: tpu_custom_call.1
$region0: #{tpu_custom_call.1}
  #allocation0 [shape = 'u32[]', space=smem, size = 0x4, offset = 0x4, fixed_abs, tag = 'smem constant byte address 0x4 - core index']
  #allocation1 [shape = 'u32[144,128]{1,0:T(1,128)}', space=vmem, size = 0x12000, scoped, tag = 'internal scratch']
  %s0 = inlined_call_operand.hbm [shape: s32[4,128], index: 0, kind: input, shape index: {}]
  %s1 = inlined_call_operand.hbm [shape: f32[2,4,128], index: 1, kind: input, shape index: {}]
  %s2 = inlined_call_operand.hbm [shape: f32[2,4,128], index: 2, kind: output, shape index: {}]
  %s3 = sld [smem:[#allocation0]]
  $region26: #{tpu_custom_call.1} parent=0
    _
  %s5 = ssub.s32 1, %s3
  %s6 = scalar_select 0, %s5, %s3
  $region1: #{tpu_custom_call.1} parent=0
    #allocation2 [shape = 'u8[2048]{0}', space=vmem, size = 0x800, scoped, tag = 'input window, operand 0, single buffered']
    #allocation3 [shape = 's32[1]{0}', space=sflag, size = 0x4, scoped, tag = 'scoped memory for tpu_custom_call.1']
    #allocation4 [shape = 's32[1]{0}', space=sflag, size = 0x4, scoped, tag = 'scoped memory for tpu_custom_call.1']
    #allocation5 [shape = 'u8[4096]{0}', space=vmem, size = 0x1000, scoped, tag = 'input window, operand 1, single buffered']
    #allocation6 [shape = 's32[1]{0}', space=sflag, size = 0x4, scoped, tag = 'scoped memory for tpu_custom_call.1']
    #allocation7 [shape = 'u8[4096]{0}', space=vmem, size = 0x1000, scoped, tag = 'output window, operand 0, single buffered']
    %7 = vsyncpa [#allocation3], 0
    %8 = vsyncpa [#allocation6], 0
    %9 = vsyncpa [#allocation4], 0
    // Predicated region
    $region2: #{tpu_custom_call.1} parent=1 // pred_check
      _
    $region3: #{tpu_custom_call.1} parent=1 // pred_check_branch
      %11 = sbr.rel (0) target = $region5
    $region4: #{tpu_custom_call.1} parent=1 // pred_region
      %s13 = ssub.s32 64, 64
      %14 = vsyncadd [#allocation3], %s13
      %s16 = sshll.u32 [#allocation2], 4
      %s17 = int_to_ptr.vmem [resolvable:$true] %s16
      %19 = dma.hbm_to_vmem [thread:$0]  %s0, 64, %s17, [#allocation3]
    $region5: #{tpu_custom_call.1} parent=1 // pred_fallthru
      _
    // Predicated region
    $region6: #{tpu_custom_call.1} parent=1 // pred_check
      _
    $region7: #{tpu_custom_call.1} parent=1 // pred_check_branch
      %21 = sbr.rel (0) target = $region9
    $region8: #{tpu_custom_call.1} parent=1 // pred_region
      %s23 = ssub.s32 128, 128
      %24 = vsyncadd [#allocation6], %s23
      %s25 = sshll.u32 [#allocation5], 4
      %s26 = int_to_ptr.vmem [resolvable:$true] %s25
      %31 = dma.hbm_to_vmem [thread:$0]  %s1, 128, %s26, [#allocation6], 64, 64, 4
    $region9: #{tpu_custom_call.1} parent=1 // pred_fallthru
      _
    // Predicated region
    $region10: #{tpu_custom_call.1} parent=1 // pred_check
      _
    $region11: #{tpu_custom_call.1} parent=1 // pred_check_branch
      %33 = sbr.rel (0) target = $region13
    $region12: #{tpu_custom_call.1} parent=1 // pred_region
      %34 = dma.done [#allocation3], 64
    $region13: #{tpu_custom_call.1} parent=1 // pred_fallthru
      _
    // Predicated region
    $region14: #{tpu_custom_call.1} parent=1 // pred_check
      _
    $region15: #{tpu_custom_call.1} parent=1 // pred_check_branch
      %36 = sbr.rel (0) target = $region17
    $region16: #{tpu_custom_call.1} parent=1 // pred_region
      %37 = dma.done [#allocation6], 128
    $region17: #{tpu_custom_call.1} parent=1 // pred_fallthru
      _
    %v38 = vlaneseq
    %v39 = vshrl.u32 %v38, 7
    %v40 = vadd.s32 %v39, 8
    %v41 = vadd.s32 %v39, 16
    %v42 = vadd.s32 %v39, 24
    %v43 = vadd.s32 %v39, 32
    %v44 = vadd.s32 %v39, 40
    %v45 = vadd.s32 %v39, 48
    %v46 = vadd.s32 %v39, 56
    %v47 = vadd.s32 %v39, 64
    %v48 = vadd.s32 %v39, 72
    %v49 = vadd.s32 %v39, 80
    %v50 = vadd.s32 %v39, 88
    %v51 = vadd.s32 %v39, 96
    %v52 = vadd.s32 %v39, 104
    %v53 = vadd.s32 %v39, 112
    %v54 = vadd.s32 %v39, 120
    %v55 = vld [vmem:[#allocation2] sm:$0x1]
    %v56 = vlaneseq
    %v57 = vshrl.u32 %v56, 7
    %v58 = vsub.s32 0, %v57
    %v59 = vrot.slane %v55, %v58
    %vm60 = vcmp.eq.s32.totalorder %v39, %v59
    %vm61 = vcmp.eq.s32.totalorder %v40, %v59
    %vm62 = vcmp.eq.s32.totalorder %v41, %v59
    %vm63 = vcmp.eq.s32.totalorder %v42, %v59
    %vm64 = vcmp.eq.s32.totalorder %v43, %v59
    %vm65 = vcmp.eq.s32.totalorder %v44, %v59
    %vm66 = vcmp.eq.s32.totalorder %v45, %v59
    %vm67 = vcmp.eq.s32.totalorder %v46, %v59
    %vm68 = vcmp.eq.s32.totalorder %v47, %v59
    %vm69 = vcmp.eq.s32.totalorder %v48, %v59
    %vm70 = vcmp.eq.s32.totalorder %v49, %v59
    %vm71 = vcmp.eq.s32.totalorder %v50, %v59
    %vm72 = vcmp.eq.s32.totalorder %v51, %v59
    %vm73 = vcmp.eq.s32.totalorder %v52, %v59
    %vm74 = vcmp.eq.s32.totalorder %v53, %v59
    %vm75 = vcmp.eq.s32.totalorder %v54, %v59
    %v76 = vsel %vm60, 1, 0
    %v77 = vsel %vm61, 1, 0
    %v78 = vsel %vm62, 1, 0
    %v79 = vsel %vm63, 1, 0
    %v80 = vsel %vm64, 1, 0
    %v81 = vsel %vm65, 1, 0
    %v82 = vsel %vm66, 1, 0
    %v83 = vsel %vm67, 1, 0
    %v84 = vsel %vm68, 1, 0
    %v85 = vsel %vm69, 1, 0
    %v86 = vsel %vm70, 1, 0
    %v87 = vsel %vm71, 1, 0
    %v88 = vsel %vm72, 1, 0
    %v89 = vsel %vm73, 1, 0
    %v90 = vsel %vm74, 1, 0
    %v91 = vsel %vm75, 1, 0
    %v92 = vcvt.s32.f32 %v76
    %v93 = vcvt.s32.f32 %v77
    %v94 = vcvt.s32.f32 %v78
    %v95 = vcvt.s32.f32 %v79
    %v96 = vcvt.s32.f32 %v80
    %v97 = vcvt.s32.f32 %v81
    %v98 = vcvt.s32.f32 %v82
    %v99 = vcvt.s32.f32 %v83
    %v100 = vcvt.s32.f32 %v84
    %v101 = vcvt.s32.f32 %v85
    %v102 = vcvt.s32.f32 %v86
    %v103 = vcvt.s32.f32 %v87
    %v104 = vcvt.s32.f32 %v88
    %v105 = vcvt.s32.f32 %v89
    %v106 = vcvt.s32.f32 %v90
    %v107 = vcvt.s32.f32 %v91
    %v108 = vld [vmem:[#allocation5] sm:$0x1]
    %v109 = vld [vmem:[#allocation5 + $0x4] sm:$0x1]
    %v112 = vrot.slane %v109, 7
    %vm113 = vcmask 1041409
    %v114 = vsel %vm113, %v112, %v108
    %116 = vmatprep.subr.mxu0 0.0
    %117 = vmatpush1.msra.mxu0 %v107
    %118 = vmatprep.subr.mxu0 0.0
    %119 = vmatpush1.msra.mxu0 %v106
    %120 = vmatprep.subr.mxu0 0.0
    %121 = vmatpush1.msra.mxu0 %v105
    %122 = vmatprep.subr.mxu0 0.0
    %123 = vmatpush1.msra.mxu0 %v104
    %124 = vmatprep.subr.mxu0 0.0
    %125 = vmatpush1.msra.mxu0 %v103
    %126 = vmatprep.subr.mxu0 0.0
    %127 = vmatpush1.msra.mxu0 %v102
    %128 = vmatprep.subr.mxu0 0.0
    %129 = vmatpush1.msra.mxu0 %v101
    %130 = vmatprep.subr.mxu0 0.0
    %131 = vmatpush1.msra.mxu0 %v100
    %132 = vmatprep.subr.mxu0 0.0
    %133 = vmatpush1.msra.mxu0 %v99
    %134 = vmatprep.subr.mxu0 0.0
    %135 = vmatpush1.msra.mxu0 %v98
    %136 = vmatprep.subr.mxu0 0.0
    %137 = vmatpush1.msra.mxu0 %v97
    %138 = vmatprep.subr.mxu0 0.0
    %139 = vmatpush1.msra.mxu0 %v96
    %140 = vmatprep.subr.mxu0 0.0
    %141 = vmatpush1.msra.mxu0 %v95
    %142 = vmatprep.subr.mxu0 0.0
    %143 = vmatpush1.msra.mxu0 %v94
    %144 = vmatprep.subr.mxu0 0.0
    %145 = vmatpush1.msra.mxu0 %v93
    %146 = vmatprep.subr.mxu0 0.0
    %147 = vmatpush1.msra.mxu0 %v92
    %148 = vmatprep.subr.mxu0 0.0
    %149 = vmatpush2.msra.mxu0 0.0
    %150 = vmatprep.subr.mxu0 0.0
    %151 = vmatpush2.msra.mxu0 0.0
    %152 = vmatprep.subr.mxu0 0.0
    %153 = vmatpush2.msra.mxu0 0.0
    %154 = vmatprep.subr.mxu0 0.0
    %155 = vmatpush2.msra.mxu0 0.0
    %156 = vmatprep.subr.mxu0 0.0
    %157 = vmatpush2.msra.mxu0 0.0
    %158 = vmatprep.subr.mxu0 0.0
    %159 = vmatpush2.msra.mxu0 0.0
    %160 = vmatprep.subr.mxu0 0.0
    %161 = vmatpush2.msra.mxu0 0.0
    %162 = vmatprep.subr.mxu0 0.0
    %163 = vmatpush2.msra.mxu0 0.0
    %164 = vmatprep.subr.mxu0 0.0
    %165 = vmatpush2.msra.mxu0 0.0
    %166 = vmatprep.subr.mxu0 0.0
    %167 = vmatpush2.msra.mxu0 0.0
    %168 = vmatprep.subr.mxu0 0.0
    %169 = vmatpush2.msra.mxu0 0.0
    %170 = vmatprep.subr.mxu0 0.0
    %171 = vmatpush2.msra.mxu0 0.0
    %172 = vmatprep.subr.mxu0 0.0
    %173 = vmatpush2.msra.mxu0 0.0
    %174 = vmatprep.subr.mxu0 0.0
    %175 = vmatpush2.msra.mxu0 0.0
    %176 = vmatprep.subr.mxu0 0.0
    %177 = vmatpush2.msra.mxu0 0.0
    %178 = vmatprep.subr.mxu0 0.0
    %179 = vmatpush2.msra.mxu0 0.0
    %180 = vmatprep.mubr.f32.mxu0 0.0
    %181 = vmatmul.mubr.f32.gmra.mxu0 %v114
    %v182 = vpop.f32.mrf.mxu0
    %v183 = vadd.f32 0.0, %v182
    %v184 = vpop.f32.mrf.mxu0
    %185 = vdwg.mxu0
    %v188 = vunpack.c.l.s4 1966171168
    %v189 = vunpack.c.0.s8 %v188
    %v190 = vlaneseq
    %v191 = vshrl.u32 %v190, 7
    %v192 = vsub.s32 %v189, %v191
    %v193 = vrot.slane %v183, %v192
    %v194 = vcombine.high %v193, %v193
    %v196 = vunpack.c.l.s4 1966171168
    %v197 = vunpack.c.0.s8 %v196
    %v198 = vlaneseq
    %v199 = vshrl.u32 %v198, 7
    %v200 = vsub.s32 %v197, %v199
    %v201 = vrot.slane %v193, %v200
    %v203 = vunpack.c.l.s4 1966171168
    %v204 = vunpack.c.0.s8 %v203
    %v205 = vlaneseq
    %v206 = vshrl.u32 %v205, 7
    %v207 = vsub.s32 %v204, %v206
    %v208 = vrot.slane %v194, %v207
    %211 = vst [vmem:[#allocation7] sm:$0x1] %v201
    %212 = vst [vmem:[#allocation7 + $0x4] sm:$0x1] %v208
    %v213 = vld [vmem:[#allocation2 + $0x1] sm:$0x1]
    %v214 = vlaneseq
    %v215 = vshrl.u32 %v214, 7
    %v216 = vsub.s32 0, %v215
    %v217 = vrot.slane %v213, %v216
    %vm218 = vcmp.eq.s32.totalorder %v39, %v217
    %vm219 = vcmp.eq.s32.totalorder %v40, %v217
    %vm220 = vcmp.eq.s32.totalorder %v41, %v217
    %vm221 = vcmp.eq.s32.totalorder %v42, %v217
    %vm222 = vcmp.eq.s32.totalorder %v43, %v217
    %vm223 = vcmp.eq.s32.totalorder %v44, %v217
    %vm224 = vcmp.eq.s32.totalorder %v45, %v217
    %vm225 = vcmp.eq.s32.totalorder %v46, %v217
    %vm226 = vcmp.eq.s32.totalorder %v47, %v217
    %vm227 = vcmp.eq.s32.totalorder %v48, %v217
    %vm228 = vcmp.eq.s32.totalorder %v49, %v217
    %vm229 = vcmp.eq.s32.totalorder %v50, %v217
    %vm230 = vcmp.eq.s32.totalorder %v51, %v217
    %vm231 = vcmp.eq.s32.totalorder %v52, %v217
    %vm232 = vcmp.eq.s32.totalorder %v53, %v217
    %vm233 = vcmp.eq.s32.totalorder %v54, %v217
    %v234 = vsel %vm218, 1, 0
    %v235 = vsel %vm219, 1, 0
    %v236 = vsel %vm220, 1, 0
    %v237 = vsel %vm221, 1, 0
    %v238 = vsel %vm222, 1, 0
    %v239 = vsel %vm223, 1, 0
    %v240 = vsel %vm224, 1, 0
    %v241 = vsel %vm225, 1, 0
    %v242 = vsel %vm226, 1, 0
    %v243 = vsel %vm227, 1, 0
    %v244 = vsel %vm228, 1, 0
    %v245 = vsel %vm229, 1, 0
    %v246 = vsel %vm230, 1, 0
    %v247 = vsel %vm231, 1, 0
    %v248 = vsel %vm232, 1, 0
    %v249 = vsel %vm233, 1, 0
    %v250 = vcvt.s32.f32 %v234
    %v251 = vcvt.s32.f32 %v235
    %v252 = vcvt.s32.f32 %v236
    %v253 = vcvt.s32.f32 %v237
    %v254 = vcvt.s32.f32 %v238
    %v255 = vcvt.s32.f32 %v239
    %v256 = vcvt.s32.f32 %v240
    %v257 = vcvt.s32.f32 %v241
    %v258 = vcvt.s32.f32 %v242
    %v259 = vcvt.s32.f32 %v243
    %v260 = vcvt.s32.f32 %v244
    %v261 = vcvt.s32.f32 %v245
    %v262 = vcvt.s32.f32 %v246
    %v263 = vcvt.s32.f32 %v247
    %v264 = vcvt.s32.f32 %v248
    %v265 = vcvt.s32.f32 %v249
    %v266 = vld [vmem:[#allocation5 + $0x1] sm:$0x1]
    %v267 = vld [vmem:[#allocation5 + $0x5] sm:$0x1]
    %v270 = vrot.slane %v267, 7
    %v271 = vsel %vm113, %v270, %v266
    %273 = vmatprep.subr.mxu0 0.0
    %274 = vmatpush1.msra.mxu0 %v265
    %275 = vmatprep.subr.mxu0 0.0
    %276 = vmatpush1.msra.mxu0 %v264
    %277 = vmatprep.subr.mxu0 0.0
    %278 = vmatpush1.msra.mxu0 %v263
    %279 = vmatprep.subr.mxu0 0.0
    %280 = vmatpush1.msra.mxu0 %v262
    %281 = vmatprep.subr.mxu0 0.0
    %282 = vmatpush1.msra.mxu0 %v261
    %283 = vmatprep.subr.mxu0 0.0
    %284 = vmatpush1.msra.mxu0 %v260
    %285 = vmatprep.subr.mxu0 0.0
    %286 = vmatpush1.msra.mxu0 %v259
    %287 = vmatprep.subr.mxu0 0.0
    %288 = vmatpush1.msra.mxu0 %v258
    %289 = vmatprep.subr.mxu0 0.0
    %290 = vmatpush1.msra.mxu0 %v257
    %291 = vmatprep.subr.mxu0 0.0
    %292 = vmatpush1.msra.mxu0 %v256
    %293 = vmatprep.subr.mxu0 0.0
    %294 = vmatpush1.msra.mxu0 %v255
    %295 = vmatprep.subr.mxu0 0.0
    %296 = vmatpush1.msra.mxu0 %v254
    %297 = vmatprep.subr.mxu0 0.0
    %298 = vmatpush1.msra.mxu0 %v253
    %299 = vmatprep.subr.mxu0 0.0
    %300 = vmatpush1.msra.mxu0 %v252
    %301 = vmatprep.subr.mxu0 0.0
    %302 = vmatpush1.msra.mxu0 %v251
    %303 = vmatprep.subr.mxu0 0.0
    %304 = vmatpush1.msra.mxu0 %v250
    %305 = vmatprep.subr.mxu0 0.0
    %306 = vmatpush2.msra.mxu0 0.0
    %307 = vmatprep.subr.mxu0 0.0
    %308 = vmatpush2.msra.mxu0 0.0
    %309 = vmatprep.subr.mxu0 0.0
    %310 = vmatpush2.msra.mxu0 0.0
    %311 = vmatprep.subr.mxu0 0.0
    %312 = vmatpush2.msra.mxu0 0.0
    %313 = vmatprep.subr.mxu0 0.0
    %314 = vmatpush2.msra.mxu0 0.0
    %315 = vmatprep.subr.mxu0 0.0
    %316 = vmatpush2.msra.mxu0 0.0
    %317 = vmatprep.subr.mxu0 0.0
    %318 = vmatpush2.msra.mxu0 0.0
    %319 = vmatprep.subr.mxu0 0.0
    %320 = vmatpush2.msra.mxu0 0.0
    %321 = vmatprep.subr.mxu0 0.0
    %322 = vmatpush2.msra.mxu0 0.0
    %323 = vmatprep.subr.mxu0 0.0
    %324 = vmatpush2.msra.mxu0 0.0
    %325 = vmatprep.subr.mxu0 0.0
    %326 = vmatpush2.msra.mxu0 0.0
    %327 = vmatprep.subr.mxu0 0.0
    %328 = vmatpush2.msra.mxu0 0.0
    %329 = vmatprep.subr.mxu0 0.0
    %330 = vmatpush2.msra.mxu0 0.0
    %331 = vmatprep.subr.mxu0 0.0
    %332 = vmatpush2.msra.mxu0 0.0
    %333 = vmatprep.subr.mxu0 0.0
    %334 = vmatpush2.msra.mxu0 0.0
    %335 = vmatprep.subr.mxu0 0.0
    %336 = vmatpush2.msra.mxu0 0.0
    %337 = vmatprep.mubr.f32.mxu0 0.0
    %338 = vmatmul.mubr.f32.gmra.mxu0 %v271
    %v339 = vpop.f32.mrf.mxu0
    %v340 = vadd.f32 0.0, %v339
    %v341 = vpop.f32.mrf.mxu0
    %342 = vdwg.mxu0
    %v345 = vunpack.c.l.s4 1966171168
    %v346 = vunpack.c.0.s8 %v345
    %v347 = vlaneseq
    %v348 = vshrl.u32 %v347, 7
    %v349 = vsub.s32 %v346, %v348
    %v350 = vrot.slane %v340, %v349
    %v351 = vcombine.high %v350, %v350
    %v353 = vunpack.c.l.s4 1966171168
    %v354 = vunpack.c.0.s8 %v353
    %v355 = vlaneseq
    %v356 = vshrl.u32 %v355, 7
    %v357 = vsub.s32 %v354, %v356
    %v358 = vrot.slane %v350, %v357
    %v360 = vunpack.c.l.s4 1966171168
    %v361 = vunpack.c.0.s8 %v360
    %v362 = vlaneseq
    %v363 = vshrl.u32 %v362, 7
    %v364 = vsub.s32 %v361, %v363
    %v365 = vrot.slane %v351, %v364
    %368 = vst [vmem:[#allocation7 + $0x1] sm:$0x1] %v358
    %369 = vst [vmem:[#allocation7 + $0x5] sm:$0x1] %v365
    %v370 = vld [vmem:[#allocation2 + $0x2] sm:$0x1]
    %v371 = vlaneseq
    %v372 = vshrl.u32 %v371, 7
    %v373 = vsub.s32 0, %v372
    %v374 = vrot.slane %v370, %v373
    %vm375 = vcmp.eq.s32.totalorder %v39, %v374
    %vm376 = vcmp.eq.s32.totalorder %v40, %v374
    %vm377 = vcmp.eq.s32.totalorder %v41, %v374
    %vm378 = vcmp.eq.s32.totalorder %v42, %v374
    %vm379 = vcmp.eq.s32.totalorder %v43, %v374
    %vm380 = vcmp.eq.s32.totalorder %v44, %v374
    %vm381 = vcmp.eq.s32.totalorder %v45, %v374
    %vm382 = vcmp.eq.s32.totalorder %v46, %v374
    %vm383 = vcmp.eq.s32.totalorder %v47, %v374
    %vm384 = vcmp.eq.s32.totalorder %v48, %v374
    %vm385 = vcmp.eq.s32.totalorder %v49, %v374
    %vm386 = vcmp.eq.s32.totalorder %v50, %v374
    %vm387 = vcmp.eq.s32.totalorder %v51, %v374
    %vm388 = vcmp.eq.s32.totalorder %v52, %v374
    %vm389 = vcmp.eq.s32.totalorder %v53, %v374
    %vm390 = vcmp.eq.s32.totalorder %v54, %v374
    %v391 = vsel %vm375, 1, 0
    %v392 = vsel %vm376, 1, 0
    %v393 = vsel %vm377, 1, 0
    %v394 = vsel %vm378, 1, 0
    %v395 = vsel %vm379, 1, 0
    %v396 = vsel %vm380, 1, 0
    %v397 = vsel %vm381, 1, 0
    %v398 = vsel %vm382, 1, 0
    %v399 = vsel %vm383, 1, 0
    %v400 = vsel %vm384, 1, 0
    %v401 = vsel %vm385, 1, 0
    %v402 = vsel %vm386, 1, 0
    %v403 = vsel %vm387, 1, 0
    %v404 = vsel %vm388, 1, 0
    %v405 = vsel %vm389, 1, 0
    %v406 = vsel %vm390, 1, 0
    %v407 = vcvt.s32.f32 %v391
    %v408 = vcvt.s32.f32 %v392
    %v409 = vcvt.s32.f32 %v393
    %v410 = vcvt.s32.f32 %v394
    %v411 = vcvt.s32.f32 %v395
    %v412 = vcvt.s32.f32 %v396
    %v413 = vcvt.s32.f32 %v397
    %v414 = vcvt.s32.f32 %v398
    %v415 = vcvt.s32.f32 %v399
    %v416 = vcvt.s32.f32 %v400
    %v417 = vcvt.s32.f32 %v401
    %v418 = vcvt.s32.f32 %v402
    %v419 = vcvt.s32.f32 %v403
    %v420 = vcvt.s32.f32 %v404
    %v421 = vcvt.s32.f32 %v405
    %v422 = vcvt.s32.f32 %v406
    %v423 = vld [vmem:[#allocation5 + $0x2] sm:$0x1]
    %v424 = vld [vmem:[#allocation5 + $0x6] sm:$0x1]
    %v427 = vrot.slane %v424, 7
    %v428 = vsel %vm113, %v427, %v423
    %430 = vmatprep.subr.mxu0 0.0
    %431 = vmatpush1.msra.mxu0 %v422
    %432 = vmatprep.subr.mxu0 0.0
    %433 = vmatpush1.msra.mxu0 %v421
    %434 = vmatprep.subr.mxu0 0.0
    %435 = vmatpush1.msra.mxu0 %v420
    %436 = vmatprep.subr.mxu0 0.0
    %437 = vmatpush1.msra.mxu0 %v419
    %438 = vmatprep.subr.mxu0 0.0
    %439 = vmatpush1.msra.mxu0 %v418
    %440 = vmatprep.subr.mxu0 0.0
    %441 = vmatpush1.msra.mxu0 %v417
    %442 = vmatprep.subr.mxu0 0.0
    %443 = vmatpush1.msra.mxu0 %v416
    %444 = vmatprep.subr.mxu0 0.0
    %445 = vmatpush1.msra.mxu0 %v415
    %446 = vmatprep.subr.mxu0 0.0
    %447 = vmatpush1.msra.mxu0 %v414
    %448 = vmatprep.subr.mxu0 0.0
    %449 = vmatpush1.msra.mxu0 %v413
    %450 = vmatprep.subr.mxu0 0.0
    %451 = vmatpush1.msra.mxu0 %v412
    %452 = vmatprep.subr.mxu0 0.0
    %453 = vmatpush1.msra.mxu0 %v411
    %454 = vmatprep.subr.mxu0 0.0
    %455 = vmatpush1.msra.mxu0 %v410
    %456 = vmatprep.subr.mxu0 0.0
    %457 = vmatpush1.msra.mxu0 %v409
    %458 = vmatprep.subr.mxu0 0.0
    %459 = vmatpush1.msra.mxu0 %v408
    %460 = vmatprep.subr.mxu0 0.0
    %461 = vmatpush1.msra.mxu0 %v407
    %462 = vmatprep.subr.mxu0 0.0
    %463 = vmatpush2.msra.mxu0 0.0
    %464 = vmatprep.subr.mxu0 0.0
    %465 = vmatpush2.msra.mxu0 0.0
    %466 = vmatprep.subr.mxu0 0.0
    %467 = vmatpush2.msra.mxu0 0.0
    %468 = vmatprep.subr.mxu0 0.0
    %469 = vmatpush2.msra.mxu0 0.0
    %470 = vmatprep.subr.mxu0 0.0
    %471 = vmatpush2.msra.mxu0 0.0
    %472 = vmatprep.subr.mxu0 0.0
    %473 = vmatpush2.msra.mxu0 0.0
    %474 = vmatprep.subr.mxu0 0.0
    %475 = vmatpush2.msra.mxu0 0.0
    %476 = vmatprep.subr.mxu0 0.0
    %477 = vmatpush2.msra.mxu0 0.0
    %478 = vmatprep.subr.mxu0 0.0
    %479 = vmatpush2.msra.mxu0 0.0
    %480 = vmatprep.subr.mxu0 0.0
    %481 = vmatpush2.msra.mxu0 0.0
    %482 = vmatprep.subr.mxu0 0.0
    %483 = vmatpush2.msra.mxu0 0.0
    %484 = vmatprep.subr.mxu0 0.0
    %485 = vmatpush2.msra.mxu0 0.0
    %486 = vmatprep.subr.mxu0 0.0
    %487 = vmatpush2.msra.mxu0 0.0
    %488 = vmatprep.subr.mxu0 0.0
    %489 = vmatpush2.msra.mxu0 0.0
    %490 = vmatprep.subr.mxu0 0.0
    %491 = vmatpush2.msra.mxu0 0.0
    %492 = vmatprep.subr.mxu0 0.0
    %493 = vmatpush2.msra.mxu0 0.0
    %494 = vmatprep.mubr.f32.mxu0 0.0
    %495 = vmatmul.mubr.f32.gmra.mxu0 %v428
    %v496 = vpop.f32.mrf.mxu0
    %v497 = vadd.f32 0.0, %v496
    %v498 = vpop.f32.mrf.mxu0
    %499 = vdwg.mxu0
    %v502 = vunpack.c.l.s4 1966171168
    %v503 = vunpack.c.0.s8 %v502
    %v504 = vlaneseq
    %v505 = vshrl.u32 %v504, 7
    %v506 = vsub.s32 %v503, %v505
    %v507 = vrot.slane %v497, %v506
    %v508 = vcombine.high %v507, %v507
    %v510 = vunpack.c.l.s4 1966171168
    %v511 = vunpack.c.0.s8 %v510
    %v512 = vlaneseq
    %v513 = vshrl.u32 %v512, 7
    %v514 = vsub.s32 %v511, %v513
    %v515 = vrot.slane %v507, %v514
    %v517 = vunpack.c.l.s4 1966171168
    %v518 = vunpack.c.0.s8 %v517
    %v519 = vlaneseq
    %v520 = vshrl.u32 %v519, 7
    %v521 = vsub.s32 %v518, %v520
    %v522 = vrot.slane %v508, %v521
    %525 = vst [vmem:[#allocation7 + $0x2] sm:$0x1] %v515
    %526 = vst [vmem:[#allocation7 + $0x6] sm:$0x1] %v522
    %v527 = vld [vmem:[#allocation2 + $0x3] sm:$0x1]
    %v528 = vlaneseq
    %v529 = vshrl.u32 %v528, 7
    %v530 = vsub.s32 0, %v529
    %v531 = vrot.slane %v527, %v530
    %vm532 = vcmp.eq.s32.totalorder %v39, %v531
    %vm533 = vcmp.eq.s32.totalorder %v40, %v531
    %vm534 = vcmp.eq.s32.totalorder %v41, %v531
    %vm535 = vcmp.eq.s32.totalorder %v42, %v531
    %vm536 = vcmp.eq.s32.totalorder %v43, %v531
    %vm537 = vcmp.eq.s32.totalorder %v44, %v531
    %vm538 = vcmp.eq.s32.totalorder %v45, %v531
    %vm539 = vcmp.eq.s32.totalorder %v46, %v531
    %vm540 = vcmp.eq.s32.totalorder %v47, %v531
    %vm541 = vcmp.eq.s32.totalorder %v48, %v531
    %vm542 = vcmp.eq.s32.totalorder %v49, %v531
    %vm543 = vcmp.eq.s32.totalorder %v50, %v531
    %vm544 = vcmp.eq.s32.totalorder %v51, %v531
    %vm545 = vcmp.eq.s32.totalorder %v52, %v531
    %vm546 = vcmp.eq.s32.totalorder %v53, %v531
    %vm547 = vcmp.eq.s32.totalorder %v54, %v531
    %v548 = vsel %vm532, 1, 0
    %v549 = vsel %vm533, 1, 0
    %v550 = vsel %vm534, 1, 0
    %v551 = vsel %vm535, 1, 0
    %v552 = vsel %vm536, 1, 0
    %v553 = vsel %vm537, 1, 0
    %v554 = vsel %vm538, 1, 0
    %v555 = vsel %vm539, 1, 0
    %v556 = vsel %vm540, 1, 0
    %v557 = vsel %vm541, 1, 0
    %v558 = vsel %vm542, 1, 0
    %v559 = vsel %vm543, 1, 0
    %v560 = vsel %vm544, 1, 0
    %v561 = vsel %vm545, 1, 0
    %v562 = vsel %vm546, 1, 0
    %v563 = vsel %vm547, 1, 0
    %v564 = vcvt.s32.f32 %v548
    %v565 = vcvt.s32.f32 %v549
    %v566 = vcvt.s32.f32 %v550
    %v567 = vcvt.s32.f32 %v551
    %v568 = vcvt.s32.f32 %v552
    %v569 = vcvt.s32.f32 %v553
    %v570 = vcvt.s32.f32 %v554
    %v571 = vcvt.s32.f32 %v555
    %v572 = vcvt.s32.f32 %v556
    %v573 = vcvt.s32.f32 %v557
    %v574 = vcvt.s32.f32 %v558
    %v575 = vcvt.s32.f32 %v559
    %v576 = vcvt.s32.f32 %v560
    %v577 = vcvt.s32.f32 %v561
    %v578 = vcvt.s32.f32 %v562
    %v579 = vcvt.s32.f32 %v563
    %v580 = vld [vmem:[#allocation5 + $0x3] sm:$0x1]
    %v581 = vld [vmem:[#allocation5 + $0x7] sm:$0x1]
    %v584 = vrot.slane %v581, 7
    %v585 = vsel %vm113, %v584, %v580
    %587 = vmatprep.subr.mxu0 0.0
    %588 = vmatpush1.msra.mxu0 %v579
    %589 = vmatprep.subr.mxu0 0.0
    %590 = vmatpush1.msra.mxu0 %v578
    %591 = vmatprep.subr.mxu0 0.0
    %592 = vmatpush1.msra.mxu0 %v577
    %593 = vmatprep.subr.mxu0 0.0
    %594 = vmatpush1.msra.mxu0 %v576
    %595 = vmatprep.subr.mxu0 0.0
    %596 = vmatpush1.msra.mxu0 %v575
    %597 = vmatprep.subr.mxu0 0.0
    %598 = vmatpush1.msra.mxu0 %v574
    %599 = vmatprep.subr.mxu0 0.0
    %600 = vmatpush1.msra.mxu0 %v573
    %601 = vmatprep.subr.mxu0 0.0
    %602 = vmatpush1.msra.mxu0 %v572
    %603 = vmatprep.subr.mxu0 0.0
    %604 = vmatpush1.msra.mxu0 %v571
    %605 = vmatprep.subr.mxu0 0.0
    %606 = vmatpush1.msra.mxu0 %v570
    %607 = vmatprep.subr.mxu0 0.0
    %608 = vmatpush1.msra.mxu0 %v569
    %609 = vmatprep.subr.mxu0 0.0
    %610 = vmatpush1.msra.mxu0 %v568
    %611 = vmatprep.subr.mxu0 0.0
    %612 = vmatpush1.msra.mxu0 %v567
    %613 = vmatprep.subr.mxu0 0.0
    %614 = vmatpush1.msra.mxu0 %v566
    %615 = vmatprep.subr.mxu0 0.0
    %616 = vmatpush1.msra.mxu0 %v565
    %617 = vmatprep.subr.mxu0 0.0
    %618 = vmatpush1.msra.mxu0 %v564
    %619 = vmatprep.subr.mxu0 0.0
    %620 = vmatpush2.msra.mxu0 0.0
    %621 = vmatprep.subr.mxu0 0.0
    %622 = vmatpush2.msra.mxu0 0.0
    %623 = vmatprep.subr.mxu0 0.0
    %624 = vmatpush2.msra.mxu0 0.0
    %625 = vmatprep.subr.mxu0 0.0
    %626 = vmatpush2.msra.mxu0 0.0
    %627 = vmatprep.subr.mxu0 0.0
    %628 = vmatpush2.msra.mxu0 0.0
    %629 = vmatprep.subr.mxu0 0.0
    %630 = vmatpush2.msra.mxu0 0.0
    %631 = vmatprep.subr.mxu0 0.0
    %632 = vmatpush2.msra.mxu0 0.0
    %633 = vmatprep.subr.mxu0 0.0
    %634 = vmatpush2.msra.mxu0 0.0
    %635 = vmatprep.subr.mxu0 0.0
    %636 = vmatpush2.msra.mxu0 0.0
    %637 = vmatprep.subr.mxu0 0.0
    %638 = vmatpush2.msra.mxu0 0.0
    %639 = vmatprep.subr.mxu0 0.0
    %640 = vmatpush2.msra.mxu0 0.0
    %641 = vmatprep.subr.mxu0 0.0
    %642 = vmatpush2.msra.mxu0 0.0
    %643 = vmatprep.subr.mxu0 0.0
    %644 = vmatpush2.msra.mxu0 0.0
    %645 = vmatprep.subr.mxu0 0.0
    %646 = vmatpush2.msra.mxu0 0.0
    %647 = vmatprep.subr.mxu0 0.0
    %648 = vmatpush2.msra.mxu0 0.0
    %649 = vmatprep.subr.mxu0 0.0
    %650 = vmatpush2.msra.mxu0 0.0
    %651 = vmatprep.mubr.f32.mxu0 0.0
    %652 = vmatmul.mubr.f32.gmra.mxu0 %v585
    %v653 = vpop.f32.mrf.mxu0
    %v654 = vadd.f32 0.0, %v653
    %v655 = vpop.f32.mrf.mxu0
    %656 = vdwg.mxu0
    %v659 = vunpack.c.l.s4 1966171168
    %v660 = vunpack.c.0.s8 %v659
    %v661 = vlaneseq
    %v662 = vshrl.u32 %v661, 7
    %v663 = vsub.s32 %v660, %v662
    %v664 = vrot.slane %v654, %v663
    %v665 = vcombine.high %v664, %v664
    %v667 = vunpack.c.l.s4 1966171168
    %v668 = vunpack.c.0.s8 %v667
    %v669 = vlaneseq
    %v670 = vshrl.u32 %v669, 7
    %v671 = vsub.s32 %v668, %v670
    %v672 = vrot.slane %v664, %v671
    %v674 = vunpack.c.l.s4 1966171168
    %v675 = vunpack.c.0.s8 %v674
    %v676 = vlaneseq
    %v677 = vshrl.u32 %v676, 7
    %v678 = vsub.s32 %v675, %v677
    %v679 = vrot.slane %v665, %v678
    %682 = vst [vmem:[#allocation7 + $0x3] sm:$0x1] %v672
    %683 = vst [vmem:[#allocation7 + $0x7] sm:$0x1] %v679
    // Predicated region
    $region18: #{tpu_custom_call.1} parent=1 // pred_check
      _
    $region19: #{tpu_custom_call.1} parent=1 // pred_check_branch
      %685 = sbr.rel (0) target = $region21
    $region20: #{tpu_custom_call.1} parent=1 // pred_region
      %s687 = ssub.s32 128, 128
      %688 = vsyncadd [#allocation4], %s687
      %s689 = sshll.u32 [#allocation7], 4
      %s690 = int_to_ptr.vmem [resolvable:$true] %s689
      %695 = dma.vmem_to_hbm [thread:$0]  %s690, 128, %s2, [#allocation4], 64, 64, 4
    $region21: #{tpu_custom_call.1} parent=1 // pred_fallthru
      _
    // Predicated region
    $region22: #{tpu_custom_call.1} parent=1 // pred_check
      _
    $region23: #{tpu_custom_call.1} parent=1 // pred_check_branch
      %697 = sbr.rel (0) target = $region25
    $region24: #{tpu_custom_call.1} parent=1 // pred_region
      %698 = dma.done [#allocation4], 128
    $region25: #{tpu_custom_call.1} parent=1 // pred_fallthru
      _
    %699 = vsyncpa [#allocation3], 1
    %700 = vsyncpa [#allocation6], 1
    %701 = vsyncpa [#allocation4], 1

</llo_original>
